<compile_context>
chip_gen: v5e
topology: v5e:2x2
jax: 0.10.0
libtpu: 0.0.40
codegen_flags: <defaults>
</compile_context>

<pallas_src>
import functools

import jax
import jax.numpy as jnp
from jax.experimental import pallas as pl
from jax.experimental.pallas import tpu as pltpu

NEG_SLOPE = 0.01  # nn.LeakyReLU default negative_slope


def _gate_kernel(x_ref, w1_ref, b1_ref, w2_ref, b2_ref, h_ref, out_ref, acc_ref,
                 *, s_total, s_tile, need_mask, lane_acc):
    # x_ref: (B_t, C, S_t)   w1_ref: (C, 64)  b1_ref: (1, 64)
    # w2_ref: (64, NC)       b2_ref: (1, NC)
    # acc_ref: f32 running spatial sum, shape (B_t, C) or (B_t, C, 128) (lane_acc).
    s = pl.program_id(1)
    n_s = pl.num_programs(1)

    @pl.when(s == 0)
    def _():
        acc_ref[...] = jnp.zeros_like(acc_ref)

    def _accumulate(masked):
        if lane_acc:
            # Lane-wide accumulator: pure VPU adds on 128-lane chunks in the hot
            # loop; the single cross-lane (XLU) reduce is deferred to the epilogue.
            def load_chunk(j):
                c = x_ref[:, :, pl.ds(j * 128, 128)].astype(jnp.float32)
                if masked:
                    lane = jax.lax.broadcasted_iota(jnp.int32, c.shape, 2)
                    c = jnp.where(s * s_tile + j * 128 + lane < s_total, c, 0.0)
                return c

            partial = load_chunk(0)
            for j in range(1, s_tile // 128):
                partial = partial + load_chunk(j)
            acc_ref[...] += partial
        else:
            x = x_ref[...].astype(jnp.float32)
            if masked:
                lane = jax.lax.broadcasted_iota(jnp.int32, x.shape, 2)
                x = jnp.where(s * s_tile + lane < s_total, x, 0.0)
            acc_ref[...] += jnp.sum(x, axis=-1)  # (B_t, C)

    if need_mask:
        # Mask only the LAST (possibly ragged) spatial tile; every other step is a
        # plain accumulate (saves ~3-4 VPU ops/element in the hot loop).
        @pl.when(s < n_s - 1)
        def _():
            _accumulate(masked=False)

        @pl.when(s == n_s - 1)
        def _():
            _accumulate(masked=True)
    else:
        _accumulate(masked=False)

    # Epilogue: GAP scale + the two tiny matmuls, once per batch tile.
    @pl.when(s == n_s - 1)
    def _():
        if lane_acc:
            pooled = jnp.sum(acc_ref[...], axis=-1) * (1.0 / float(s_total))
        else:
            pooled = acc_ref[...] * (1.0 / float(s_total))

        # layer1: Linear(C, 64) + LeakyReLU
        h = jnp.dot(pooled, w1_ref[...], preferred_element_type=jnp.float32)
        h = h + b1_ref[...]
        h = jnp.where(h > 0, h, NEG_SLOPE * h)
        h_ref[...] = h.astype(h_ref.dtype)

        # head: Linear(64, num_classes)
        out = jnp.dot(h, w2_ref[...], preferred_element_type=jnp.float32)
        out = out + b2_ref[...]
        out_ref[...] = out.astype(out_ref.dtype)


def gate_forward(x_nchw, w1, b1, w2, b2, *, s_tile=None):
    """x_nchw: (B, C, H, W). Returns (hidden (B,64), logits (B,num_classes))."""
    B, C, H, W = x_nchw.shape
    S = H * W
    hidden_dim = w1.shape[1]
    num_classes = w2.shape[1]
    itemsize = x_nchw.dtype.itemsize
    w_itemsize = w1.dtype.itemsize

    # ---- Tile sizing: ~10 MiB per x buffer (double-buffered ~20 MiB). Safe on every
    # generation once vmem_limit_bytes is raised (v5e/v6e: 128 MiB phys, v7x: 64 MiB).
    X_BUF_BUDGET = 10 * 1024 * 1024
    min_s = S if S <= 128 else 128  # smallest legal lane tile

    # Batch tile: multiple of 8 (or full B), coupled to the VMEM budget so that
    # even the minimal 128-lane x tile fits.
    b_cands = [c for c in (64, 32, 16, 8) if B % c == 0]
    if not b_cands:
        b_tile = B  # small batch: full-B block satisfies the sublane rule
    else:
        b_tile = b_cands[-1]  # fallback: smallest (8)
        for c in b_cands:     # largest candidate whose minimal x tile fits the budget
            if c * C * min_s * itemsize <= X_BUF_BUDGET:
                b_tile = c
                break
    # TODO(synk): if even b_tile=8 with a 128-lane tile exceeds the budget (very large
    # C), a C-split grid axis with partial-sum accumulation would be needed.

    # Spatial tile: whole image whenever it fits the budget (no masking, one
    # contiguous DMA per (b, c) row); otherwise a 128-multiple sized to the budget.
    if s_tile is None:
        if S <= 128 or b_tile * C * S * itemsize <= X_BUF_BUDGET:
            s_tile = S
        else:
            s_tile = X_BUF_BUDGET // (b_tile * C * itemsize)
            s_tile = max(128, (s_tile // 128) * 128)
    need_mask = (S % s_tile) != 0
    grid_s = pl.cdiv(S, s_tile)

    # Lane-wide accumulator only pays off with a real multi-step reduction and a
    # small scratch footprint.
    lane_acc = (grid_s > 1 and s_tile % 128 == 0
                and b_tile * C * 128 * 4 <= 2 * 1024 * 1024)
    acc_shape = (b_tile, C, 128) if lane_acc else (b_tile, C)

    x_flat = x_nchw.reshape(B, C, S)  # glue reshape
    b1_2d = b1.reshape(1, hidden_dim)
    b2_2d = b2.reshape(1, num_classes)

    grid = (B // b_tile, grid_s)

    # Explicit scoped-VMEM limit: working set + headroom, >= 32 MiB, < v7x physical.
    x_bytes = b_tile * C * s_tile * itemsize
    w_bytes = (C * hidden_dim + hidden_dim
               + hidden_dim * num_classes + num_classes) * w_itemsize
    out_bytes = b_tile * (hidden_dim + num_classes) * itemsize
    acc_bytes = 4
    for d in acc_shape:
        acc_bytes *= d
    workset = 2 * x_bytes + 2 * w_bytes + 2 * out_bytes + acc_bytes
    vmem_limit = int(min(max(workset + (4 << 20), 32 << 20), 64 << 20))

    kernel = functools.partial(
        _gate_kernel, s_total=S, s_tile=s_tile,
        need_mask=need_mask, lane_acc=lane_acc)

    cost = pl.CostEstimate(
        flops=B * C * S + 2 * B * C * hidden_dim + 2 * B * hidden_dim * num_classes,
        transcendentals=0,
        bytes_accessed=(x_flat.size * itemsize
                        + (w1.size + b1.size + w2.size + b2.size) * w_itemsize
                        + B * (hidden_dim + num_classes) * itemsize),
    )

    h, out = pl.pallas_call(
        kernel,
        out_shape=(
            jax.ShapeDtypeStruct((B, hidden_dim), x_nchw.dtype),
            jax.ShapeDtypeStruct((B, num_classes), x_nchw.dtype),
        ),
        grid_spec=pltpu.PrefetchScalarGridSpec(
            num_scalar_prefetch=0,
            grid=grid,
            in_specs=[
                # Streamed activation tiles (double-buffered by Pallas).
                pl.BlockSpec((b_tile, C, s_tile), lambda b, s: (b, 0, s)),
                # Tiny params: constant index maps -> stay VMEM-resident.
                pl.BlockSpec((C, hidden_dim), lambda b, s: (0, 0)),
                pl.BlockSpec((1, hidden_dim), lambda b, s: (0, 0)),
                pl.BlockSpec((hidden_dim, num_classes), lambda b, s: (0, 0)),
                pl.BlockSpec((1, num_classes), lambda b, s: (0, 0)),
            ],
            out_specs=(
                pl.BlockSpec((b_tile, hidden_dim), lambda b, s: (b, 0)),
                pl.BlockSpec((b_tile, num_classes), lambda b, s: (b, 0)),
            ),
            scratch_shapes=[pltpu.VMEM(acc_shape, jnp.float32)],
        ),
        compiler_params=pltpu.CompilerParams(
            dimension_semantics=("parallel", "arbitrary"),
            vmem_limit_bytes=vmem_limit),
        cost_estimate=cost,
    )(x_flat, w1, b1_2d, w2, b2_2d)
    return h, out


# TODO(synk): dropout branch (nn.Dropout(0.5)) not implemented; module constructed with dropout=False.


def _reference(x, w1, b1, w2, b2):
    B, C, H, W = x.shape
    pooled = jnp.mean(x.reshape(B, C, H * W).astype(jnp.float32), axis=-1)
    h = pooled @ w1 + b1
    h = jnp.where(h > 0, h, NEG_SLOPE * h)
    out = h @ w2 + b2
    return h, out


if __name__ == "__main__":
    key = jax.random.PRNGKey(0)
    B, C, H, W = 2, 4, 16, 16
    HIDDEN, NUM_CLASSES = 64, 8

    k_x, k_w1, k_b1, k_w2, k_b2, k_x2 = jax.random.split(key, 6)
    x = jax.random.normal(k_x, (B, C, H, W), dtype=jnp.float32)

    # Linear weights stored transposed: (in_features, out_features)
    w1 = jax.random.normal(k_w1, (C, HIDDEN), dtype=jnp.float32) * 0.1
    b1 = jax.random.normal(k_b1, (HIDDEN,), dtype=jnp.float32) * 0.01
    w2 = jax.random.normal(k_w2, (HIDDEN, NUM_CLASSES), dtype=jnp.float32) * 0.1
    b2 = jax.random.normal(k_b2, (NUM_CLASSES,), dtype=jnp.float32) * 0.01

    # Test 1: auto tile sizing (whole-image tile, single spatial step, no masking).
    hidden, logits = gate_forward(x, w1, b1, w2, b2)
    jax.block_until_ready((hidden, logits))
    h_ref, o_ref = _reference(x, w1, b1, w2, b2)
    assert hidden.shape == (B, HIDDEN) and logits.shape == (B, NUM_CLASSES)
    assert jnp.allclose(hidden, h_ref, atol=1e-5), "hidden mismatch"
    assert jnp.allclose(logits, o_ref, atol=1e-5), "logits mismatch"

    # Test 2: multi-step spatial reduction with a ragged last tile
    # (exercises the gated-mask path and the lane-wide accumulator).
    x2 = jax.random.normal(k_x2, (B, C, 15, 15), dtype=jnp.float32)
    hidden2, logits2 = gate_forward(x2, w1, b1, w2, b2, s_tile=128)
    jax.block_until_ready((hidden2, logits2))
    h_ref2, o_ref2 = _reference(x2, w1, b1, w2, b2)
    assert jnp.allclose(hidden2, h_ref2, atol=1e-5), "hidden mismatch (masked)"
    assert jnp.allclose(logits2, o_ref2, atol=1e-5), "logits mismatch (masked)"

    print("KERNEL_OK")
</pallas_src>

<mosaic_0001>
module attributes {stable_mosaic.version = 11 : i64} {
  func.func @_gate_kernel(%arg0: i32, %arg1: i32, %arg2: memref<2x4x256xf32, #tpu.memory_space<vmem>>, %arg3: memref<4x64xf32, #tpu.memory_space<vmem>>, %arg4: memref<1x64xf32, #tpu.memory_space<vmem>>, %arg5: memref<64x8xf32, #tpu.memory_space<vmem>>, %arg6: memref<1x8xf32, #tpu.memory_space<vmem>>, %arg7: memref<2x64xf32, #tpu.memory_space<vmem>>, %arg8: memref<2x8xf32, #tpu.memory_space<vmem>>, %arg9: memref<2x4xf32, #tpu.memory_space<vmem>>) attributes {dimension_semantics = [#tpu.dimension_semantics<parallel>, #tpu.dimension_semantics<arbitrary>], iteration_bounds = array<i64: 1, 1>, scalar_prefetch = 0 : i64, scratch_operands = 1 : i64, tpu.core_type = #tpu.core_type<tc>, window_params = [{transform_indices = @transform_0, window_bounds = array<i64: 2, 4, 256>}, {pipeline_mode = #tpu.pipeline_mode<synchronous>, transform_indices = @transform_1, window_bounds = array<i64: 4, 64>}, {pipeline_mode = #tpu.pipeline_mode<synchronous>, transform_indices = @transform_2, window_bounds = array<i64: 1, 64>}, {pipeline_mode = #tpu.pipeline_mode<synchronous>, transform_indices = @transform_3, window_bounds = array<i64: 64, 8>}, {pipeline_mode = #tpu.pipeline_mode<synchronous>, transform_indices = @transform_4, window_bounds = array<i64: 1, 8>}, {transform_indices = @transform_5, window_bounds = array<i64: 2, 64>}, {transform_indices = @transform_6, window_bounds = array<i64: 2, 8>}]} {
    %c0_i32 = arith.constant 0 : i32
    %0 = arith.cmpi eq, %arg1, %c0_i32 : i32
    %1 = arith.extui %0 : i1 to i32
    %c0_i32_0 = arith.constant 0 : i32
    %2 = arith.cmpi ne, %1, %c0_i32_0 : i32
    scf.if %2 {
      %cst_9 = arith.constant 0.000000e+00 : f32
      %11 = vector.broadcast %cst_9 : f32 to vector<2x4xf32>
      %c0_10 = arith.constant 0 : index
      %c0_11 = arith.constant 0 : index
      %12 = vector.load %arg9[%c0_10, %c0_11] : memref<2x4xf32, #tpu.memory_space<vmem>>, vector<2x4xf32>
      tpu.vector_store %arg9[%c0_10, %c0_11], %11 {strides = array<i32>} : memref<2x4xf32, #tpu.memory_space<vmem>>, vector<2x4xf32>,
    } else {
    }
    %c0 = arith.constant 0 : index
    %c0_1 = arith.constant 0 : index
    %c0_2 = arith.constant 0 : index
    %3 = vector.load %arg2[%c0, %c0_1, %c0_2] : memref<2x4x256xf32, #tpu.memory_space<vmem>>, vector<2x4x256xf32>
    %c0_3 = arith.constant 0 : index
    %c0_4 = arith.constant 0 : index
    %4 = vector.load %arg9[%c0_3, %c0_4] : memref<2x4xf32, #tpu.memory_space<vmem>>, vector<2x4xf32>
    %cst = arith.constant dense<0.000000e+00> : vector<2x4xf32>
    %5 = vector.multi_reduction <add>, %3, %cst [2] : vector<2x4x256xf32> to vector<2x4xf32>
    %6 = arith.addf %4, %5 : vector<2x4xf32>
    %c0_5 = arith.constant 0 : index
    %c0_6 = arith.constant 0 : index
    %7 = vector.load %arg9[%c0_5, %c0_6] : memref<2x4xf32, #tpu.memory_space<vmem>>, vector<2x4xf32>
    tpu.vector_store %arg9[%c0_5, %c0_6], %6 {strides = array<i32>} : memref<2x4xf32, #tpu.memory_space<vmem>>, vector<2x4xf32>,
    %c0_i32_7 = arith.constant 0 : i32
    %8 = arith.cmpi eq, %arg1, %c0_i32_7 : i32
    %9 = arith.extui %8 : i1 to i32
    %c0_i32_8 = arith.constant 0 : i32
    %10 = arith.cmpi ne, %9, %c0_i32_8 : i32
    scf.if %10 {
      %c0_9 = arith.constant 0 : index
      %c0_10 = arith.constant 0 : index
      %11 = vector.load %arg9[%c0_9, %c0_10] : memref<2x4xf32, #tpu.memory_space<vmem>>, vector<2x4xf32>
      %cst_11 = arith.constant 3.906250e-03 : f32
      %12 = vector.broadcast %cst_11 : f32 to vector<2x4xf32>
      %13 = arith.mulf %11, %12 : vector<2x4xf32>
      %c0_12 = arith.constant 0 : index
      %c0_13 = arith.constant 0 : index
      %14 = vector.load %arg3[%c0_12, %c0_13] : memref<4x64xf32, #tpu.memory_space<vmem>>, vector<4x64xf32>
      %cst_14 = arith.constant dense<0.000000e+00> : vector<2x64xf32>
      %15 = tpu.matmul %13, %14, %cst_14 {dimension_numbers = #tpu.dot_dimension_numbers<[1], [0], [0], [1], [0, 0, 1, 1], [], []>} : vector<2x4xf32>, vector<4x64xf32>, vector<2x64xf32> -> vector<2x64xf32>
      %c0_15 = arith.constant 0 : index
      %c0_16 = arith.constant 0 : index
      %16 = vector.load %arg4[%c0_15, %c0_16] : memref<1x64xf32, #tpu.memory_space<vmem>>, vector<1x64xf32>
      %17 = vector.broadcast %16 : vector<1x64xf32> to vector<2x64xf32>
      %18 = arith.addf %15, %17 : vector<2x64xf32>
      %cst_17 = arith.constant 0.000000e+00 : f32
      %19 = vector.broadcast %cst_17 : f32 to vector<2x64xf32>
      %20 = arith.cmpf ogt, %18, %19 : vector<2x64xf32>
      %cst_18 = arith.constant 0.00999999977 : f32
      %21 = vector.broadcast %cst_18 : f32 to vector<2x64xf32>
      %22 = arith.mulf %21, %18 : vector<2x64xf32>
      %23 = arith.select %20, %18, %22 : vector<2x64xi1>, vector<2x64xf32>
      %c0_19 = arith.constant 0 : index
      %c0_20 = arith.constant 0 : index
      %24 = vector.load %arg7[%c0_19, %c0_20] : memref<2x64xf32, #tpu.memory_space<vmem>>, vector<2x64xf32>
      tpu.vector_store %arg7[%c0_19, %c0_20], %23 {strides = array<i32>} : memref<2x64xf32, #tpu.memory_space<vmem>>, vector<2x64xf32>,
      %c0_21 = arith.constant 0 : index
      %c0_22 = arith.constant 0 : index
      %25 = vector.load %arg5[%c0_21, %c0_22] : memref<64x8xf32, #tpu.memory_space<vmem>>, vector<64x8xf32>
      %cst_23 = arith.constant dense<0.000000e+00> : vector<2x8xf32>
      %26 = tpu.matmul %23, %25, %cst_23 {dimension_numbers = #tpu.dot_dimension_numbers<[1], [0], [0], [1], [0, 0, 1, 1], [], []>} : vector<2x64xf32>, vector<64x8xf32>, vector<2x8xf32> -> vector<2x8xf32>
      %c0_24 = arith.constant 0 : index
      %c0_25 = arith.constant 0 : index
      %27 = vector.load %arg6[%c0_24, %c0_25] : memref<1x8xf32, #tpu.memory_space<vmem>>, vector<1x8xf32>
      %28 = vector.broadcast %27 : vector<1x8xf32> to vector<2x8xf32>
      %29 = arith.addf %26, %28 : vector<2x8xf32>
      %c0_26 = arith.constant 0 : index
      %c0_27 = arith.constant 0 : index
      %30 = vector.load %arg8[%c0_26, %c0_27] : memref<2x8xf32, #tpu.memory_space<vmem>>, vector<2x8xf32>
      tpu.vector_store %arg8[%c0_26, %c0_27], %29 {strides = array<i32>} : memref<2x8xf32, #tpu.memory_space<vmem>>, vector<2x8xf32>,
    } else {
    }
    return
  }
  func.func @transform_0(%arg0: i32, %arg1: i32) -> (i32, i32, i32) {
    %c0_i32 = arith.constant 0 : i32
    %c0_i32_0 = arith.constant 0 : i32
    return %arg0, %c0_i32, %arg1 : i32, i32, i32
  }
  func.func @transform_1(%arg0: i32, %arg1: i32) -> (i32, i32) {
    %c0_i32 = arith.constant 0 : i32
    %c0_i32_0 = arith.constant 0 : i32
    %c0_i32_1 = arith.constant 0 : i32
    return %c0_i32, %c0_i32_0 : i32, i32
  }
  func.func @transform_2(%arg0: i32, %arg1: i32) -> (i32, i32) {
    %c0_i32 = arith.constant 0 : i32
    %c0_i32_0 = arith.constant 0 : i32
    %c0_i32_1 = arith.constant 0 : i32
    return %c0_i32, %c0_i32_0 : i32, i32
  }
  func.func @transform_3(%arg0: i32, %arg1: i32) -> (i32, i32) {
    %c0_i32 = arith.constant 0 : i32
    %c0_i32_0 = arith.constant 0 : i32
    %c0_i32_1 = arith.constant 0 : i32
    return %c0_i32, %c0_i32_0 : i32, i32
  }
  func.func @transform_4(%arg0: i32, %arg1: i32) -> (i32, i32) {
    %c0_i32 = arith.constant 0 : i32
    %c0_i32_0 = arith.constant 0 : i32
    %c0_i32_1 = arith.constant 0 : i32
    return %c0_i32, %c0_i32_0 : i32, i32
  }
  func.func @transform_5(%arg0: i32, %arg1: i32) -> (i32, i32) {
    %c0_i32 = arith.constant 0 : i32
    %c0_i32_0 = arith.constant 0 : i32
    return %arg0, %c0_i32 : i32, i32
  }
  func.func @transform_6(%arg0: i32, %arg1: i32) -> (i32, i32) {
    %c0_i32 = arith.constant 0 : i32
    %c0_i32_0 = arith.constant 0 : i32
    return %arg0, %c0_i32 : i32, i32
  }
}

</mosaic_0001>

<llo_original>
// kernel: tpu_custom_call.1
$region0: #{tpu_custom_call.1}
  #allocation0 [shape = 'u32[]', space=smem, size = 0x4, offset = 0x4, fixed_abs, tag = 'smem constant byte address 0x4 - core index']
  #allocation1 [shape = 'u32[72,128]{1,0:T(1,128)}', space=vmem, size = 0x9000, scoped, tag = 'internal scratch']
  #allocation2 [shape = 'f32[2,4]{1,0:T(2,128)}', space=vmem, size = 0x400, scoped, tag = 'scratch operand']
  %s0 = inlined_call_operand.vmem [shape: f32[2,4,256], index: 0, kind: input, shape index: {}]
  %s1 = inlined_call_operand.vmem [shape: f32[4,64], index: 1, kind: input, shape index: {}]
  %s2 = inlined_call_operand.vmem [shape: f32[1,64], index: 2, kind: input, shape index: {}]
  %s3 = inlined_call_operand.vmem [shape: f32[64,8], index: 3, kind: input, shape index: {}]
  %s4 = inlined_call_operand.vmem [shape: f32[1,8], index: 4, kind: input, shape index: {}]
  %s5 = inlined_call_operand.hbm [shape: f32[2,64], index: 5, kind: output, shape index: {0}]
  %s6 = inlined_call_operand.hbm [shape: f32[2,8], index: 6, kind: output, shape index: {1}]
  %7 = xla_tuple %s5, %s6
  %s8 = sld [smem:[#allocation0]]
  $region46: #{tpu_custom_call.1} parent=0
    _
  %s10 = ssub.s32 1, %s8
  %s11 = scalar_select 0, %s10, %s8
  $region1: #{tpu_custom_call.1} parent=0
    #allocation3 [shape = 'u8[1024]{0}', space=vmem, size = 0x400, scoped, tag = 'output window, operand 0, single buffered']
    #allocation4 [shape = 's32[1]{0}', space=sflag, size = 0x4, scoped, tag = 'scoped memory for tpu_custom_call.1']
    #allocation5 [shape = 'u8[1024]{0}', space=vmem, size = 0x400, scoped, tag = 'output window, operand 1, single buffered']
    #allocation6 [shape = 's32[1]{0}', space=sflag, size = 0x4, scoped, tag = 'scoped memory for tpu_custom_call.1']
    %12 = vsyncpa [#allocation4], 0
    %13 = vsyncpa [#allocation6], 0
    // Predicated region
    $region2: #{tpu_custom_call.1} parent=1 // pred_check
      _
    $region3: #{tpu_custom_call.1} parent=1 // pred_check_branch
      %15 = sbr.rel (0) target = $region5
    $region4: #{tpu_custom_call.1} parent=1 // pred_region
      _
    $region5: #{tpu_custom_call.1} parent=1 // pred_fallthru
      _
    // Predicated region
    $region6: #{tpu_custom_call.1} parent=1 // pred_check
      _
    $region7: #{tpu_custom_call.1} parent=1 // pred_check_branch
      %17 = sbr.rel (0) target = $region9
    $region8: #{tpu_custom_call.1} parent=1 // pred_region
      _
    $region9: #{tpu_custom_call.1} parent=1 // pred_fallthru
      _
    // Predicated region
    $region10: #{tpu_custom_call.1} parent=1 // pred_check
      _
    $region11: #{tpu_custom_call.1} parent=1 // pred_check_branch
      %19 = sbr.rel (0) target = $region13
    $region12: #{tpu_custom_call.1} parent=1 // pred_region
      _
    $region13: #{tpu_custom_call.1} parent=1 // pred_fallthru
      _
    // Predicated region
    $region14: #{tpu_custom_call.1} parent=1 // pred_check
      _
    $region15: #{tpu_custom_call.1} parent=1 // pred_check_branch
      %21 = sbr.rel (0) target = $region17
    $region16: #{tpu_custom_call.1} parent=1 // pred_region
      _
    $region17: #{tpu_custom_call.1} parent=1 // pred_fallthru
      _
    // Predicated region
    $region18: #{tpu_custom_call.1} parent=1 // pred_check
      _
    $region19: #{tpu_custom_call.1} parent=1 // pred_check_branch
      %23 = sbr.rel (0) target = $region21
    $region20: #{tpu_custom_call.1} parent=1 // pred_region
      _
    $region21: #{tpu_custom_call.1} parent=1 // pred_fallthru
      _
    %p24 = scmp.eq.s32.totalorder 0, 0
    // Predicated region
    $region22: #{tpu_custom_call.1} parent=1 // pred_check
      %p25 = pneg %p24
    $region23: #{tpu_custom_call.1} parent=1 // pred_check_branch
      %27 = sbr.rel (%p25) target = $region25
    $region24: #{tpu_custom_call.1} parent=1 // pred_region
      %vm28 = vcmask 25600
      %29 = vst.msk [vmem:[#allocation2] sm:$0x3] %vm28, 0.0
    $region25: #{tpu_custom_call.1} parent=1 // pred_fallthru
      _
    %v30 = vld [vmem:[%s0] sm:$0xff]
    %v31 = vld [vmem:[%s0 + $0x8] sm:$0xff]
    %v32 = vld [vmem:[#allocation2] sm:$0x3]
    %35 = vst [vmem:[#allocation1] ss:$2 sm:$0xff] %v30
    %v36 = vld.sshfl [vmem:[#allocation1] sm:$0xff pattern:$0x75316420]
    %v37 = vld.sshfl [vmem:[#allocation1 + $0x8] sm:$0xff pattern:$0x75316420]
    %s38 = scalar_lea.vmem [#allocation1], 16
    %39 = vst [vmem:[%s38] ss:$2 sm:$0xff] %v31
    %v40 = vld.sshfl [vmem:[#allocation1 + $0x10] sm:$0xff pattern:$0x75316420]
    %v41 = vld.sshfl [vmem:[#allocation1 + $0x18] sm:$0xff pattern:$0x75316420]
    %vm46 = vcmask 1043456
    %v47 = vsel %vm46, %v36, 0.0
    %v48 = vsel %vm46, %v37, 0.0
    %v49 = vadd.f32 %v47, %v48
    %50 = vadd.xlane.f32.xlu0 %v49
    %v51 = vpop.xlane.xlu0 %50
    %v52 = vsel %vm46, %v40, 0.0
    %v53 = vsel %vm46, %v41, 0.0
    %v54 = vadd.f32 %v52, %v53
    %55 = vadd.xlane.f32.xlu0 %v54
    %v56 = vpop.xlane.xlu0 %55
    %v59 = vlaneseq
    %v60 = vand.u32 %v59, 127
    %v61 = vperm.slane %v51, %v60
    %v62 = vperm.slane %v56, %v60
    %vm63 = vcmask 1041409
    %v64 = vsel %vm63, %v62, %v61
    %v66 = vadd.f32 %v32, %v64
    %vm67 = vcmask 25600
    %68 = vst.msk [vmem:[#allocation2] sm:$0x3] %vm67, %v66
    // Predicated region
    $region26: #{tpu_custom_call.1} parent=1 // pred_check
      %p69 = pneg %p24
    $region27: #{tpu_custom_call.1} parent=1 // pred_check_branch
      %71 = sbr.rel (%p69) target = $region29
    $region28: #{tpu_custom_call.1} parent=1 // pred_region
      %v72 = vld [vmem:[#allocation2] sm:$0x3]
      %v73 = vmul.f32 %v72, 0.00390625
      %v74 = vld [vmem:[%s1] sm:$0xf]
      %v75 = vld [vmem:[%s2] sm:$0x1]
      %v77 = vperm.slane %v75, 0
      %vm79 = vcmask 31744
      %v81 = vsel %vm79, %v73, 0
      %v84 = vsel %vm46, %v74, 0
      %86 = vmatpush.msra.mxu0 0.0
      %87 = vmatpush.msra.mxu0 0.0
      %88 = vmatpush.msra.mxu0 0.0
      %89 = vmatpush.msra.mxu0 0.0
      %90 = vmatpush.msra.mxu0 0.0
      %91 = vmatpush.msra.mxu0 0.0
      %92 = vmatpush.msra.mxu0 0.0
      %93 = vmatpush.msra.mxu0 0.0
      %94 = vmatpush.msra.mxu0 0.0
      %95 = vmatpush.msra.mxu0 0.0
      %96 = vmatpush.msra.mxu0 0.0
      %97 = vmatpush.msra.mxu0 0.0
      %98 = vmatpush.msra.mxu0 0.0
      %99 = vmatpush.msra.mxu0 0.0
      %100 = vmatpush.msra.mxu0 0.0
      %101 = vmatpush.msra.mxu0 %v84
      %102 = vmatmul.f32.gmra.mxu0 %v81
      %v103 = vpop.f32.mrf.mxu0
      %v104 = vadd.f32 %v77, %v103
      %105 = vdwg.mxu0
      %vm106 = vcmp.gt.f32.partialorder %v104, 0.0
      %v107 = vmul.f32 %v104, 0.01
      %v108 = vsel %vm106, %v104, %v107
      %vm109 = vcmask 517120
      %110 = vst.msk [vmem:[#allocation3] sm:$0x3] %vm109, %v108
      %v111 = vld [vmem:[%s3] sm:$0xff]
      %v112 = vld [vmem:[%s3 + $0x8] sm:$0xff]
      %v113 = vld [vmem:[%s3 + $0x10] sm:$0xff]
      %v114 = vld [vmem:[%s3 + $0x18] sm:$0xff]
      %v115 = vld [vmem:[%s3 + $0x20] sm:$0xff]
      %v116 = vld [vmem:[%s3 + $0x28] sm:$0xff]
      %v117 = vld [vmem:[%s3 + $0x30] sm:$0xff]
      %v118 = vld [vmem:[%s3 + $0x38] sm:$0xff]
      %v119 = vld [vmem:[%s4] sm:$0x1]
      %v121 = vperm.slane %v119, 0
      %vm123 = vcmask 523264
      %v125 = vsel %vm123, %v108, 0
      %127 = vmatpush.msra.mxu0 0.0
      %128 = vmatpush.msra.mxu0 0.0
      %129 = vmatpush.msra.mxu0 0.0
      %130 = vmatpush.msra.mxu0 0.0
      %131 = vmatpush.msra.mxu0 0.0
      %132 = vmatpush.msra.mxu0 0.0
      %133 = vmatpush.msra.mxu0 0.0
      %134 = vmatpush.msra.mxu0 0.0
      %135 = vmatpush.msra.mxu0 %v118
      %136 = vmatpush.msra.mxu0 %v117
      %137 = vmatpush.msra.mxu0 %v116
      %138 = vmatpush.msra.mxu0 %v115
      %139 = vmatpush.msra.mxu0 %v114
      %140 = vmatpush.msra.mxu0 %v113
      %141 = vmatpush.msra.mxu0 %v112
      %142 = vmatpush.msra.mxu0 %v111
      %143 = vmatmul.f32.gmra.mxu0 %v125
      %v144 = vpop.f32.mrf.mxu0
      %v145 = vadd.f32 %v121, %v144
      %146 = vdwg.mxu0
      %vm147 = vcmask 58368
      %148 = vst.msk [vmem:[#allocation5] sm:$0x3] %vm147, %v145
    $region29: #{tpu_custom_call.1} parent=1 // pred_fallthru
      _
    // Predicated region
    $region30: #{tpu_custom_call.1} parent=1 // pred_check
      _
    $region31: #{tpu_custom_call.1} parent=1 // pred_check_branch
      %150 = sbr.rel (0) target = $region33
    $region32: #{tpu_custom_call.1} parent=1 // pred_region
      %152 = vsyncadd [#allocation4], 0
      %s154 = sshll.u32 [#allocation3], 4
      %s155 = int_to_ptr.vmem [resolvable:$true] %s154
      %s156 = sshll.u32 %s5, 4
      %s157 = int_to_ptr.hbm [resolvable:$true] %s156
      %159 = dma.vmem_to_hbm [thread:$0]  %s155, 32, %s157, [#allocation4]
    $region33: #{tpu_custom_call.1} parent=1 // pred_fallthru
      _
    // Predicated region
    $region34: #{tpu_custom_call.1} parent=1 // pred_check
      _
    $region35: #{tpu_custom_call.1} parent=1 // pred_check_branch
      %161 = sbr.rel (0) target = $region37
    $region36: #{tpu_custom_call.1} parent=1 // pred_region
      %163 = vsyncadd [#allocation6], 0
      %s165 = sshll.u32 [#allocation5], 4
      %s166 = int_to_ptr.vmem [resolvable:$true] %s165
      %s167 = sshll.u32 %s6, 4
      %s168 = int_to_ptr.hbm [resolvable:$true] %s167
      %170 = dma.vmem_to_hbm [thread:$0]  %s166, 32, %s168, [#allocation6]
    $region37: #{tpu_custom_call.1} parent=1 // pred_fallthru
      _
    // Predicated region
    $region38: #{tpu_custom_call.1} parent=1 // pred_check
      _
    $region39: #{tpu_custom_call.1} parent=1 // pred_check_branch
      %172 = sbr.rel (0) target = $region41
    $region40: #{tpu_custom_call.1} parent=1 // pred_region
      %174 = dma.done [#allocation4], 32
    $region41: #{tpu_custom_call.1} parent=1 // pred_fallthru
      _
    // Predicated region
    $region42: #{tpu_custom_call.1} parent=1 // pred_check
      _
    $region43: #{tpu_custom_call.1} parent=1 // pred_check_branch
      %176 = sbr.rel (0) target = $region45
    $region44: #{tpu_custom_call.1} parent=1 // pred_region
      %178 = dma.done [#allocation6], 32
    $region45: #{tpu_custom_call.1} parent=1 // pred_fallthru
      _
    %179 = vsyncpa [#allocation4], 1
    %180 = vsyncpa [#allocation6], 1

</llo_original>
